<compile_context>
chip_gen: v5e
topology: v5e:2x2
jax: 0.10.0
libtpu: 0.0.40
codegen_flags: <defaults>
</compile_context>

<pallas_src>
import functools

import jax
import jax.numpy as jnp
from jax.experimental import pallas as pl
from jax.experimental.pallas import tpu as pltpu

_LANE = 128
_SUBLANE = 8
_TB_MAX = 256          # batch rows per grid step for large batches
_UNROLL_MAX_LAYERS = 4  # unroll hidden loop up to this many layers


def _round_up(x, m):
    return (x + m - 1) // m * m


def _dqn_kernel(x_ref, w_in_ref, b_in_ref, w_fc_ref, b_fc_ref,
                w_out_ref, b_out_ref, o_ref, *, num_hidden_layers):
    """One batch tile of the SimpleDQN forward, everything VMEM-resident.

    x_ref:     (TB, S)       state tile
    w_in_ref:  (S, H)        input_layer weight (in, out) layout
    b_in_ref:  (1, H)
    w_fc_ref:  (H, H)        shared hidden weight (reused num_hidden_layers times)
    b_fc_ref:  (1, H)
    w_out_ref: (H, A_PAD)    output weight, lane-padded to 128
    b_out_ref: (1, A_PAD)
    o_ref:     (TB, A_PAD)   lane-dense Q-value slab (valid cols sliced in wrapper)
    """
    x = x_ref[...]
    w_in = w_in_ref[...]
    b_in = b_in_ref[...].astype(jnp.float32)
    w_fc = w_fc_ref[...]
    b_fc = b_fc_ref[...].astype(jnp.float32)
    w_out = w_out_ref[...]
    b_out = b_out_ref[...].astype(jnp.float32)

    def linear(h, w, b):
        # MXU operands may be bf16; accumulate + bias/ReLU stay in f32 (v5e VPU
        # has no bf16 path, and f32 accumulation preserves DQN head accuracy).
        return jnp.dot(h.astype(w.dtype), w, preferred_element_type=jnp.float32) + b

    # input layer + ReLU
    h = jnp.maximum(linear(x.astype(jnp.float32), w_in, b_in), 0.0)

    # hidden layers: same fc weights reused, as in the PyTorch module
    if num_hidden_layers <= _UNROLL_MAX_LAYERS:
        for _ in range(num_hidden_layers):
            h = jnp.maximum(linear(h, w_fc, b_fc), 0.0)
    else:
        h = jax.lax.fori_loop(
            0, num_hidden_layers,
            lambda _, hh: jnp.maximum(linear(hh, w_fc, b_fc), 0.0),
            h)

    # output layer (no activation) -> unmasked lane-dense store
    o_ref[...] = linear(h, w_out, b_out).astype(o_ref.dtype)


def prepare_params(params, *, weight_dtype=jnp.float32):
    """One-time parameter prep (hoisted out of the per-step forward path).

    params: torch-convention dict:
        w_in  (H, S), b_in  (H,)
        w_fc  (H, H), b_fc  (H,)
        w_out (A, H), b_out (A,)
    Returns dict with (in, out) weights, (1, out) biases, output lane-padded to 128.
    weight_dtype=jnp.bfloat16 is recommended on v6e / v7x (accumulation stays f32).
    """
    H, S = params["w_in"].shape
    A = params["w_out"].shape[0]
    a_pad = _round_up(A, _LANE)

    w_out = jnp.zeros((H, a_pad), jnp.float32).at[:, :A].set(params["w_out"].T)
    b_out = jnp.zeros((1, a_pad), jnp.float32).at[:, :A].set(
        params["b_out"].reshape(1, A))

    return dict(
        w_in=params["w_in"].T.astype(weight_dtype),           # (S, H)
        b_in=params["b_in"].reshape(1, H).astype(jnp.float32),
        w_fc=params["w_fc"].T.astype(weight_dtype),            # (H, H)
        b_fc=params["b_fc"].reshape(1, H).astype(jnp.float32),
        w_out=w_out.astype(weight_dtype),                      # (H, A_PAD)
        b_out=b_out.astype(jnp.float32),                       # (1, A_PAD)
        num_state=S, num_hidden=H, num_action=A, num_action_padded=a_pad,
    )


def simple_dqn_forward(state, prepared, num_hidden_layers):
    """Pallas-backed SimpleDQN forward.  state: (B, num_state) float32."""
    B, S = state.shape
    H = prepared["num_hidden"]
    A = prepared["num_action"]
    A_PAD = prepared["num_action_padded"]

    # Batch tile: small batches get one snug tile, big batches get TB=256 tiles.
    TB = min(_TB_MAX, _round_up(B, _SUBLANE))
    B_pad = _round_up(B, TB)
    if B_pad != B:
        state = jnp.pad(state, ((0, B_pad - B), (0, 0)))
    grid = (B_pad // TB,)

    w_bytes = jnp.dtype(prepared["w_in"].dtype).itemsize
    act_bytes = jnp.dtype(state.dtype).itemsize
    # double-buffered activation / output tiles + (double-buffered) resident weights
    vmem_needed = (2 * TB * S * act_bytes
                   + 2 * TB * A_PAD * act_bytes
                   + 2 * ((S * H + H * H + H * A_PAD) * w_bytes
                          + (2 * H + A_PAD) * 4))
    vmem_limit = max(2 * vmem_needed + (1 << 20), 4 << 20)

    flops = 2 * B_pad * (S * H + num_hidden_layers * H * H + H * A_PAD)
    bytes_accessed = (B_pad * S * act_bytes + B_pad * A_PAD * act_bytes
                      + (S * H + H * H + H * A_PAD) * w_bytes
                      + (2 * H + A_PAD) * 4)

    kernel = functools.partial(_dqn_kernel, num_hidden_layers=num_hidden_layers)
    const = lambda shape: pl.BlockSpec(shape, lambda i: (0,) * len(shape))

    out = pl.pallas_call(
        kernel,
        out_shape=jax.ShapeDtypeStruct((B_pad, A_PAD), state.dtype),
        grid=grid,
        in_specs=[
            pl.BlockSpec((TB, S), lambda i: (i, 0)),   # state tile moves with grid
            const((S, H)), const((1, H)),              # weights stay VMEM-resident
            const((H, H)), const((1, H)),
            const((H, A_PAD)), const((1, A_PAD)),
        ],
        out_specs=pl.BlockSpec((TB, A_PAD), lambda i: (i, 0)),
        compiler_params=pltpu.CompilerParams(
            dimension_semantics=("parallel",),          # megacore sharding on v7x
            vmem_limit_bytes=int(vmem_limit)),
        cost_estimate=pl.CostEstimate(
            flops=int(flops), transcendentals=0,
            bytes_accessed=int(bytes_accessed)),
    )(state, prepared["w_in"], prepared["b_in"],
      prepared["w_fc"], prepared["b_fc"],
      prepared["w_out"], prepared["b_out"])

    return out[:B, :A]


def _torch_linear_init(key, out_features, in_features):
    """Deterministic init matching nn.Linear defaults: U(-1/sqrt(fan_in), ...)."""
    kw, kb = jax.random.split(key)
    bound = 1.0 / jnp.sqrt(jnp.float32(in_features))
    w = jax.random.uniform(kw, (out_features, in_features), jnp.float32, -bound, bound)
    b = jax.random.uniform(kb, (out_features,), jnp.float32, -bound, bound)
    return w, b


def _reference_forward(state, params, num_hidden_layers):
    """Pure-JAX reference mirroring the PyTorch module."""
    h = jnp.maximum(state @ params["w_in"].T + params["b_in"], 0.0)
    for _ in range(num_hidden_layers):
        h = jnp.maximum(h @ params["w_fc"].T + params["b_fc"], 0.0)
    return h @ params["w_out"].T + params["b_out"]


if __name__ == "__main__":
    num_state = 16
    num_action = 4
    num_hidden_units = 32
    num_hidden_layers = 2
    batch = 8

    root = jax.random.PRNGKey(0)
    k_in, k_fc, k_out, k_x = jax.random.split(root, 4)

    w_in, b_in = _torch_linear_init(k_in, num_hidden_units, num_state)
    w_fc, b_fc = _torch_linear_init(k_fc, num_hidden_units, num_hidden_units)
    w_out, b_out = _torch_linear_init(k_out, num_action, num_hidden_units)
    params = dict(w_in=w_in, b_in=b_in, w_fc=w_fc, b_fc=b_fc,
                  w_out=w_out, b_out=b_out)

    state = jax.random.normal(k_x, (batch, num_state), jnp.float32)

    # One-time parameter prep (transpose / bias reshape / lane-pad the head).
    # Use weight_dtype=jnp.bfloat16 on v6e/v7x for full-rate MXU; f32 here keeps
    # the tight numerical check against the reference.
    prepared = prepare_params(params, weight_dtype=jnp.float32)

    q_pallas = simple_dqn_forward(state, prepared, num_hidden_layers)
    q_pallas = jax.block_until_ready(q_pallas)

    q_ref = _reference_forward(state, params, num_hidden_layers)
    assert q_pallas.shape == (batch, num_action)
    assert jnp.allclose(q_pallas, q_ref, atol=1e-5, rtol=1e-5), "mismatch vs reference"

    # Also exercise the batch-tiled path (grid > 1) to make sure tiling is sound.
    big_state = jax.random.normal(jax.random.PRNGKey(1), (600, num_state), jnp.float32)
    q_big = jax.block_until_ready(
        simple_dqn_forward(big_state, prepared, num_hidden_layers))
    q_big_ref = _reference_forward(big_state, params, num_hidden_layers)
    assert q_big.shape == (600, num_action)
    assert jnp.allclose(q_big, q_big_ref, atol=1e-5, rtol=1e-5), "mismatch (tiled)"

    print("KERNEL_OK")
</pallas_src>

<mosaic_0001>
module attributes {stable_mosaic.version = 11 : i64} {
  func.func @_dqn_kernel(%arg0: i32, %arg1: memref<8x16xf32, #tpu.memory_space<vmem>>, %arg2: memref<16x32xf32, #tpu.memory_space<vmem>>, %arg3: memref<1x32xf32, #tpu.memory_space<vmem>>, %arg4: memref<32x32xf32, #tpu.memory_space<vmem>>, %arg5: memref<1x32xf32, #tpu.memory_space<vmem>>, %arg6: memref<32x128xf32, #tpu.memory_space<vmem>>, %arg7: memref<1x128xf32, #tpu.memory_space<vmem>>, %arg8: memref<8x128xf32, #tpu.memory_space<vmem>>) attributes {dimension_semantics = [#tpu.dimension_semantics<parallel>], iteration_bounds = array<i64: 1>, scalar_prefetch = 0 : i64, scratch_operands = 0 : i64, tpu.core_type = #tpu.core_type<tc>, window_params = [{transform_indices = @transform_0, window_bounds = array<i64: 8, 16>}, {pipeline_mode = #tpu.pipeline_mode<synchronous>, transform_indices = @transform_1, window_bounds = array<i64: 16, 32>}, {pipeline_mode = #tpu.pipeline_mode<synchronous>, transform_indices = @transform_2, window_bounds = array<i64: 1, 32>}, {pipeline_mode = #tpu.pipeline_mode<synchronous>, transform_indices = @transform_3, window_bounds = array<i64: 32, 32>}, {pipeline_mode = #tpu.pipeline_mode<synchronous>, transform_indices = @transform_4, window_bounds = array<i64: 1, 32>}, {pipeline_mode = #tpu.pipeline_mode<synchronous>, transform_indices = @transform_5, window_bounds = array<i64: 32, 128>}, {pipeline_mode = #tpu.pipeline_mode<synchronous>, transform_indices = @transform_6, window_bounds = array<i64: 1, 128>}, {transform_indices = @transform_7, window_bounds = array<i64: 8, 128>}]} {
    %c0 = arith.constant 0 : index
    %c0_0 = arith.constant 0 : index
    %0 = vector.load %arg1[%c0, %c0_0] : memref<8x16xf32, #tpu.memory_space<vmem>>, vector<8x16xf32>
    %c0_1 = arith.constant 0 : index
    %c0_2 = arith.constant 0 : index
    %1 = vector.load %arg2[%c0_1, %c0_2] : memref<16x32xf32, #tpu.memory_space<vmem>>, vector<16x32xf32>
    %c0_3 = arith.constant 0 : index
    %c0_4 = arith.constant 0 : index
    %2 = vector.load %arg3[%c0_3, %c0_4] : memref<1x32xf32, #tpu.memory_space<vmem>>, vector<1x32xf32>
    %c0_5 = arith.constant 0 : index
    %c0_6 = arith.constant 0 : index
    %3 = vector.load %arg4[%c0_5, %c0_6] : memref<32x32xf32, #tpu.memory_space<vmem>>, vector<32x32xf32>
    %c0_7 = arith.constant 0 : index
    %c0_8 = arith.constant 0 : index
    %4 = vector.load %arg5[%c0_7, %c0_8] : memref<1x32xf32, #tpu.memory_space<vmem>>, vector<1x32xf32>
    %c0_9 = arith.constant 0 : index
    %c0_10 = arith.constant 0 : index
    %5 = vector.load %arg6[%c0_9, %c0_10] : memref<32x128xf32, #tpu.memory_space<vmem>>, vector<32x128xf32>
    %c0_11 = arith.constant 0 : index
    %c0_12 = arith.constant 0 : index
    %6 = vector.load %arg7[%c0_11, %c0_12] : memref<1x128xf32, #tpu.memory_space<vmem>>, vector<1x128xf32>
    %cst = arith.constant dense<0.000000e+00> : vector<8x32xf32>
    %7 = tpu.matmul %0, %1, %cst {dimension_numbers = #tpu.dot_dimension_numbers<[1], [0], [0], [1], [0, 0, 1, 1], [], []>} : vector<8x16xf32>, vector<16x32xf32>, vector<8x32xf32> -> vector<8x32xf32>
    %8 = vector.broadcast %2 : vector<1x32xf32> to vector<8x32xf32>
    %9 = arith.addf %7, %8 : vector<8x32xf32>
    %cst_13 = arith.constant 0.000000e+00 : f32
    %10 = vector.broadcast %cst_13 : f32 to vector<8x32xf32>
    %11 = arith.maximumf %9, %10 : vector<8x32xf32>
    %cst_14 = arith.constant dense<0.000000e+00> : vector<8x32xf32>
    %12 = tpu.matmul %11, %3, %cst_14 {dimension_numbers = #tpu.dot_dimension_numbers<[1], [0], [0], [1], [0, 0, 1, 1], [], []>} : vector<8x32xf32>, vector<32x32xf32>, vector<8x32xf32> -> vector<8x32xf32>
    %13 = vector.broadcast %4 : vector<1x32xf32> to vector<8x32xf32>
    %14 = arith.addf %12, %13 : vector<8x32xf32>
    %cst_15 = arith.constant 0.000000e+00 : f32
    %15 = vector.broadcast %cst_15 : f32 to vector<8x32xf32>
    %16 = arith.maximumf %14, %15 : vector<8x32xf32>
    %cst_16 = arith.constant dense<0.000000e+00> : vector<8x32xf32>
    %17 = tpu.matmul %16, %3, %cst_16 {dimension_numbers = #tpu.dot_dimension_numbers<[1], [0], [0], [1], [0, 0, 1, 1], [], []>} : vector<8x32xf32>, vector<32x32xf32>, vector<8x32xf32> -> vector<8x32xf32>
    %18 = vector.broadcast %4 : vector<1x32xf32> to vector<8x32xf32>
    %19 = arith.addf %17, %18 : vector<8x32xf32>
    %cst_17 = arith.constant 0.000000e+00 : f32
    %20 = vector.broadcast %cst_17 : f32 to vector<8x32xf32>
    %21 = arith.maximumf %19, %20 : vector<8x32xf32>
    %cst_18 = arith.constant dense<0.000000e+00> : vector<8x128xf32>
    %22 = tpu.matmul %21, %5, %cst_18 {dimension_numbers = #tpu.dot_dimension_numbers<[1], [0], [0], [1], [0, 0, 1, 1], [], []>} : vector<8x32xf32>, vector<32x128xf32>, vector<8x128xf32> -> vector<8x128xf32>
    %23 = vector.broadcast %6 : vector<1x128xf32> to vector<8x128xf32>
    %24 = arith.addf %22, %23 : vector<8x128xf32>
    %c0_19 = arith.constant 0 : index
    %c0_20 = arith.constant 0 : index
    %25 = vector.load %arg8[%c0_19, %c0_20] : memref<8x128xf32, #tpu.memory_space<vmem>>, vector<8x128xf32>
    tpu.vector_store %arg8[%c0_19, %c0_20], %24 {strides = array<i32>} : memref<8x128xf32, #tpu.memory_space<vmem>>, vector<8x128xf32>,
    return
  }
  func.func @transform_0(%arg0: i32) -> (i32, i32) {
    %c0_i32 = arith.constant 0 : i32
    %c0_i32_0 = arith.constant 0 : i32
    return %arg0, %c0_i32 : i32, i32
  }
  func.func @transform_1(%arg0: i32) -> (i32, i32) {
    %c0_i32 = arith.constant 0 : i32
    %c0_i32_0 = arith.constant 0 : i32
    %c0_i32_1 = arith.constant 0 : i32
    return %c0_i32, %c0_i32_0 : i32, i32
  }
  func.func @transform_2(%arg0: i32) -> (i32, i32) {
    %c0_i32 = arith.constant 0 : i32
    %c0_i32_0 = arith.constant 0 : i32
    %c0_i32_1 = arith.constant 0 : i32
    return %c0_i32, %c0_i32_0 : i32, i32
  }
  func.func @transform_3(%arg0: i32) -> (i32, i32) {
    %c0_i32 = arith.constant 0 : i32
    %c0_i32_0 = arith.constant 0 : i32
    %c0_i32_1 = arith.constant 0 : i32
    return %c0_i32, %c0_i32_0 : i32, i32
  }
  func.func @transform_4(%arg0: i32) -> (i32, i32) {
    %c0_i32 = arith.constant 0 : i32
    %c0_i32_0 = arith.constant 0 : i32
    %c0_i32_1 = arith.constant 0 : i32
    return %c0_i32, %c0_i32_0 : i32, i32
  }
  func.func @transform_5(%arg0: i32) -> (i32, i32) {
    %c0_i32 = arith.constant 0 : i32
    %c0_i32_0 = arith.constant 0 : i32
    %c0_i32_1 = arith.constant 0 : i32
    return %c0_i32, %c0_i32_0 : i32, i32
  }
  func.func @transform_6(%arg0: i32) -> (i32, i32) {
    %c0_i32 = arith.constant 0 : i32
    %c0_i32_0 = arith.constant 0 : i32
    %c0_i32_1 = arith.constant 0 : i32
    return %c0_i32, %c0_i32_0 : i32, i32
  }
  func.func @transform_7(%arg0: i32) -> (i32, i32) {
    %c0_i32 = arith.constant 0 : i32
    %c0_i32_0 = arith.constant 0 : i32
    return %arg0, %c0_i32 : i32, i32
  }
}

</mosaic_0001>

<llo_original>
// kernel: tpu_custom_call.1
$region0: #{tpu_custom_call.1}
  #allocation0 [shape = 'u32[]', space=smem, size = 0x4, offset = 0x4, fixed_abs, tag = 'smem constant byte address 0x4 - core index']
  #allocation1 [shape = 'u32[72,128]{1,0:T(1,128)}', space=vmem, size = 0x9000, scoped, tag = 'internal scratch']
  %s0 = inlined_call_operand.hbm [shape: f32[8,16], index: 0, kind: input, shape index: {}]
  %s1 = inlined_call_operand.hbm [shape: f32[16,32], index: 1, kind: input, shape index: {}]
  %s2 = inlined_call_operand.vmem [shape: f32[1,32], index: 2, kind: input, shape index: {}]
  %s3 = inlined_call_operand.hbm [shape: f32[32,32], index: 3, kind: input, shape index: {}]
  %s4 = inlined_call_operand.vmem [shape: f32[1,32], index: 4, kind: input, shape index: {}]
  %s5 = inlined_call_operand.hbm [shape: f32[32,128], index: 5, kind: input, shape index: {}]
  %s6 = inlined_call_operand.vmem [shape: f32[1,128], index: 6, kind: input, shape index: {}]
  %s7 = inlined_call_operand.hbm [shape: f32[8,128], index: 7, kind: output, shape index: {}]
  %s8 = sld [smem:[#allocation0]]
  $region54: #{tpu_custom_call.1} parent=0
    _
  %s10 = ssub.s32 1, %s8
  %s11 = scalar_select 0, %s10, %s8
  $region1: #{tpu_custom_call.1} parent=0
    #allocation2 [shape = 'u8[4096]{0}', space=vmem, size = 0x1000, scoped, tag = 'input window, operand 0, single buffered']
    #allocation3 [shape = 's32[1]{0}', space=sflag, size = 0x4, scoped, tag = 'scoped memory for tpu_custom_call.1']
    #allocation4 [shape = 's32[1]{0}', space=sflag, size = 0x4, scoped, tag = 'scoped memory for tpu_custom_call.1']
    #allocation5 [shape = 'u8[8192]{0}', space=vmem, size = 0x2000, scoped, tag = 'input window, operand 1, single buffered']
    #allocation6 [shape = 's32[1]{0}', space=sflag, size = 0x4, scoped, tag = 'scoped memory for tpu_custom_call.1']
    #allocation7 [shape = 'u8[16384]{0}', space=vmem, size = 0x4000, scoped, tag = 'input window, operand 3, single buffered']
    #allocation8 [shape = 'u8[16384]{0}', space=vmem, size = 0x4000, scoped, tag = 'input window, operand 5, single buffered']
    #allocation9 [shape = 's32[1]{0}', space=sflag, size = 0x4, scoped, tag = 'scoped memory for tpu_custom_call.1']
    #allocation10 [shape = 'u8[4096]{0}', space=vmem, size = 0x1000, scoped, tag = 'output window, operand 0, single buffered']
    %12 = vsyncpa [#allocation3], 0
    %13 = vsyncpa [#allocation6], 0
    %14 = vsyncpa [#allocation9], 0
    %15 = vsyncpa [#allocation4], 0
    // Predicated region
    $region2: #{tpu_custom_call.1} parent=1 // pred_check
      _
    $region3: #{tpu_custom_call.1} parent=1 // pred_check_branch
      %17 = sbr.rel (0) target = $region5
    $region4: #{tpu_custom_call.1} parent=1 // pred_region
      %19 = vsyncadd [#allocation3], 0
      %s21 = sshll.u32 %s0, 4
      %s22 = int_to_ptr.hbm [resolvable:$true] %s21
      %s23 = sshll.u32 [#allocation2], 4
      %s24 = int_to_ptr.vmem [resolvable:$true] %s23
      %26 = dma.hbm_to_vmem [thread:$0]  %s22, 128, %s24, [#allocation3]
    $region5: #{tpu_custom_call.1} parent=1 // pred_fallthru
      _
    // Predicated region
    $region6: #{tpu_custom_call.1} parent=1 // pred_check
      _
    $region7: #{tpu_custom_call.1} parent=1 // pred_check_branch
      %28 = sbr.rel (0) target = $region9
    $region8: #{tpu_custom_call.1} parent=1 // pred_region
      %30 = vsyncadd [#allocation6], 0
      %s31 = sshll.u32 %s1, 4
      %s32 = int_to_ptr.hbm [resolvable:$true] %s31
      %s33 = sshll.u32 [#allocation5], 4
      %s34 = int_to_ptr.vmem [resolvable:$true] %s33
      %39 = dma.hbm_to_vmem [thread:$0]  %s32, 256, %s34, [#allocation6], 128, 128, 8
    $region9: #{tpu_custom_call.1} parent=1 // pred_fallthru
      _
    // Predicated region
    $region10: #{tpu_custom_call.1} parent=1 // pred_check
      _
    $region11: #{tpu_custom_call.1} parent=1 // pred_check_branch
      %41 = sbr.rel (0) target = $region13
    $region12: #{tpu_custom_call.1} parent=1 // pred_region
      _
    $region13: #{tpu_custom_call.1} parent=1 // pred_fallthru
      _
    // Predicated region
    $region14: #{tpu_custom_call.1} parent=1 // pred_check
      _
    $region15: #{tpu_custom_call.1} parent=1 // pred_check_branch
      %43 = sbr.rel (0) target = $region17
    $region16: #{tpu_custom_call.1} parent=1 // pred_region
      %45 = vsyncadd [#allocation6], 0
      %s46 = sshll.u32 %s3, 4
      %s47 = int_to_ptr.hbm [resolvable:$true] %s46
      %s48 = sshll.u32 [#allocation7], 4
      %s49 = int_to_ptr.vmem [resolvable:$true] %s48
      %54 = dma.hbm_to_vmem [thread:$0]  %s47, 512, %s49, [#allocation6], 128, 128, 8
    $region17: #{tpu_custom_call.1} parent=1 // pred_fallthru
      _
    // Predicated region
    $region18: #{tpu_custom_call.1} parent=1 // pred_check
      _
    $region19: #{tpu_custom_call.1} parent=1 // pred_check_branch
      %56 = sbr.rel (0) target = $region21
    $region20: #{tpu_custom_call.1} parent=1 // pred_region
      _
    $region21: #{tpu_custom_call.1} parent=1 // pred_fallthru
      _
    // Predicated region
    $region22: #{tpu_custom_call.1} parent=1 // pred_check
      _
    $region23: #{tpu_custom_call.1} parent=1 // pred_check_branch
      %58 = sbr.rel (0) target = $region25
    $region24: #{tpu_custom_call.1} parent=1 // pred_region
      %60 = vsyncadd [#allocation9], 0
      %s61 = sshll.u32 %s5, 4
      %s62 = int_to_ptr.hbm [resolvable:$true] %s61
      %s63 = sshll.u32 [#allocation8], 4
      %s64 = int_to_ptr.vmem [resolvable:$true] %s63
      %69 = dma.hbm_to_vmem [thread:$0]  %s62, 512, %s64, [#allocation9], 128, 128, 8
    $region25: #{tpu_custom_call.1} parent=1 // pred_fallthru
      _
    // Predicated region
    $region26: #{tpu_custom_call.1} parent=1 // pred_check
      _
    $region27: #{tpu_custom_call.1} parent=1 // pred_check_branch
      %71 = sbr.rel (0) target = $region29
    $region28: #{tpu_custom_call.1} parent=1 // pred_region
      _
    $region29: #{tpu_custom_call.1} parent=1 // pred_fallthru
      _
    // Predicated region
    $region30: #{tpu_custom_call.1} parent=1 // pred_check
      _
    $region31: #{tpu_custom_call.1} parent=1 // pred_check_branch
      %73 = sbr.rel (0) target = $region33
    $region32: #{tpu_custom_call.1} parent=1 // pred_region
      %75 = dma.done [#allocation3], 128
    $region33: #{tpu_custom_call.1} parent=1 // pred_fallthru
      _
    // Predicated region
    $region34: #{tpu_custom_call.1} parent=1 // pred_check
      _
    $region35: #{tpu_custom_call.1} parent=1 // pred_check_branch
      %77 = sbr.rel (0) target = $region37
    $region36: #{tpu_custom_call.1} parent=1 // pred_region
      %79 = dma.done [#allocation6], 256
    $region37: #{tpu_custom_call.1} parent=1 // pred_fallthru
      _
    // Predicated region
    $region38: #{tpu_custom_call.1} parent=1 // pred_check
      _
    $region39: #{tpu_custom_call.1} parent=1 // pred_check_branch
      %81 = sbr.rel (0) target = $region41
    $region40: #{tpu_custom_call.1} parent=1 // pred_region
      %83 = dma.done [#allocation6], 512
    $region41: #{tpu_custom_call.1} parent=1 // pred_fallthru
      _
    // Predicated region
    $region42: #{tpu_custom_call.1} parent=1 // pred_check
      _
    $region43: #{tpu_custom_call.1} parent=1 // pred_check_branch
      %85 = sbr.rel (0) target = $region45
    $region44: #{tpu_custom_call.1} parent=1 // pred_region
      %87 = dma.done [#allocation9], 512
    $region45: #{tpu_custom_call.1} parent=1 // pred_fallthru
      _
    %v88 = vld [vmem:[#allocation2] sm:$0xff]
    %v89 = vld [vmem:[#allocation5] sm:$0xff]
    %v90 = vld [vmem:[#allocation5 + $0x8] sm:$0xff]
    %v91 = vld [vmem:[%s2] sm:$0x1]
    %v92 = vld [vmem:[#allocation7] sm:$0xff]
    %v93 = vld [vmem:[#allocation7 + $0x8] sm:$0xff]
    %v94 = vld [vmem:[#allocation7 + $0x10] sm:$0xff]
    %v95 = vld [vmem:[#allocation7 + $0x18] sm:$0xff]
    %v96 = vld [vmem:[%s4] sm:$0x1]
    %v97 = vld [vmem:[#allocation8] sm:$0xff]
    %v98 = vld [vmem:[#allocation8 + $0x8] sm:$0xff]
    %v99 = vld [vmem:[#allocation8 + $0x10] sm:$0xff]
    %v100 = vld [vmem:[#allocation8 + $0x18] sm:$0xff]
    %v101 = vld [vmem:[%s6] sm:$0x1]
    %v103 = vperm.slane %v91, 0
    %vm105 = vcmask 130048
    %v107 = vsel %vm105, %v88, 0
    %109 = vmatpush.msra.mxu0 0.0
    %110 = vmatpush.msra.mxu0 0.0
    %111 = vmatpush.msra.mxu0 0.0
    %112 = vmatpush.msra.mxu0 0.0
    %113 = vmatpush.msra.mxu0 0.0
    %114 = vmatpush.msra.mxu0 0.0
    %115 = vmatpush.msra.mxu0 0.0
    %116 = vmatpush.msra.mxu0 0.0
    %117 = vmatpush.msra.mxu0 0.0
    %118 = vmatpush.msra.mxu0 0.0
    %119 = vmatpush.msra.mxu0 0.0
    %120 = vmatpush.msra.mxu0 0.0
    %121 = vmatpush.msra.mxu0 0.0
    %122 = vmatpush.msra.mxu0 0.0
    %123 = vmatpush.msra.mxu0 %v90
    %124 = vmatpush.msra.mxu0 %v89
    %125 = vmatmul.f32.gmra.mxu0 %v107
    %v126 = vpop.f32.mrf.mxu0
    %v127 = vadd.f32 %v103, %v126
    %128 = vdwg.mxu0
    %v129 = vmax.f32 %v127, 0.0
    %v131 = vperm.slane %v96, 0
    %vm133 = vcmask 261120
    %v135 = vsel %vm133, %v129, 0
    %137 = vmatpush.msra.mxu0 0.0
    %138 = vmatpush.msra.mxu0 0.0
    %139 = vmatpush.msra.mxu0 0.0
    %140 = vmatpush.msra.mxu0 0.0
    %141 = vmatpush.msra.mxu0 0.0
    %142 = vmatpush.msra.mxu0 0.0
    %143 = vmatpush.msra.mxu0 0.0
    %144 = vmatpush.msra.mxu0 0.0
    %145 = vmatpush.msra.mxu0 0.0
    %146 = vmatpush.msra.mxu0 0.0
    %147 = vmatpush.msra.mxu0 0.0
    %148 = vmatpush.msra.mxu0 0.0
    %149 = vmatpush.msra.mxu0 %v95
    %150 = vmatpush.msra.mxu0 %v94
    %151 = vmatpush.msra.mxu0 %v93
    %152 = vmatpush.msra.mxu0 %v92
    %153 = vmatmul.f32.gmra.mxu0 %v135
    %v154 = vpop.f32.mrf.mxu0
    %v155 = vadd.f32 %v131, %v154
    %156 = vdwg.mxu0
    %v157 = vmax.f32 %v155, 0.0
    %v159 = vsel %vm133, %v157, 0
    %161 = vmatpush.msra.mxu0 0.0
    %162 = vmatpush.msra.mxu0 0.0
    %163 = vmatpush.msra.mxu0 0.0
    %164 = vmatpush.msra.mxu0 0.0
    %165 = vmatpush.msra.mxu0 0.0
    %166 = vmatpush.msra.mxu0 0.0
    %167 = vmatpush.msra.mxu0 0.0
    %168 = vmatpush.msra.mxu0 0.0
    %169 = vmatpush.msra.mxu0 0.0
    %170 = vmatpush.msra.mxu0 0.0
    %171 = vmatpush.msra.mxu0 0.0
    %172 = vmatpush.msra.mxu0 0.0
    %173 = vmatpush.msra.mxu0 %v95
    %174 = vmatpush.msra.mxu0 %v94
    %175 = vmatpush.msra.mxu0 %v93
    %176 = vmatpush.msra.mxu0 %v92
    %177 = vmatmul.f32.gmra.mxu0 %v159
    %v178 = vpop.f32.mrf.mxu0
    %v179 = vadd.f32 %v131, %v178
    %180 = vdwg.mxu0
    %v181 = vmax.f32 %v179, 0.0
    %v183 = vperm.slane %v101, 0
    %v186 = vsel %vm133, %v181, 0
    %188 = vmatpush.msra.mxu0 0.0
    %189 = vmatpush.msra.mxu0 0.0
    %190 = vmatpush.msra.mxu0 0.0
    %191 = vmatpush.msra.mxu0 0.0
    %192 = vmatpush.msra.mxu0 0.0
    %193 = vmatpush.msra.mxu0 0.0
    %194 = vmatpush.msra.mxu0 0.0
    %195 = vmatpush.msra.mxu0 0.0
    %196 = vmatpush.msra.mxu0 0.0
    %197 = vmatpush.msra.mxu0 0.0
    %198 = vmatpush.msra.mxu0 0.0
    %199 = vmatpush.msra.mxu0 0.0
    %200 = vmatpush.msra.mxu0 %v100
    %201 = vmatpush.msra.mxu0 %v99
    %202 = vmatpush.msra.mxu0 %v98
    %203 = vmatpush.msra.mxu0 %v97
    %204 = vmatmul.f32.gmra.mxu0 %v186
    %v205 = vpop.f32.mrf.mxu0
    %v206 = vadd.f32 %v183, %v205
    %207 = vdwg.mxu0
    %208 = vst [vmem:[#allocation10] sm:$0xff] %v206
    // Predicated region
    $region46: #{tpu_custom_call.1} parent=1 // pred_check
      _
    $region47: #{tpu_custom_call.1} parent=1 // pred_check_branch
      %210 = sbr.rel (0) target = $region49
    $region48: #{tpu_custom_call.1} parent=1 // pred_region
      %212 = vsyncadd [#allocation4], 0
      %s214 = sshll.u32 [#allocation10], 4
      %s215 = int_to_ptr.vmem [resolvable:$true] %s214
      %s216 = sshll.u32 %s7, 4
      %s217 = int_to_ptr.hbm [resolvable:$true] %s216
      %219 = dma.vmem_to_hbm [thread:$0]  %s215, 128, %s217, [#allocation4]
    $region49: #{tpu_custom_call.1} parent=1 // pred_fallthru
      _
    // Predicated region
    $region50: #{tpu_custom_call.1} parent=1 // pred_check
      _
    $region51: #{tpu_custom_call.1} parent=1 // pred_check_branch
      %221 = sbr.rel (0) target = $region53
    $region52: #{tpu_custom_call.1} parent=1 // pred_region
      %223 = dma.done [#allocation4], 128
    $region53: #{tpu_custom_call.1} parent=1 // pred_fallthru
      _
    %224 = vsyncpa [#allocation3], 1
    %225 = vsyncpa [#allocation6], 1
    %226 = vsyncpa [#allocation9], 1
    %227 = vsyncpa [#allocation4], 1

</llo_original>
